<compile_context>
chip_gen: v5e
topology: v5e:2x2
jax: 0.10.0
libtpu: 0.0.40
codegen_flags: <defaults>
</compile_context>

<pallas_src>
import functools
import math

import jax
import jax.numpy as jnp
from jax.experimental import pallas as pl
from jax.experimental.pallas import tpu as pltpu


# ----------------------------------------------------------------------------
# Fused kernel: all projections + bias + RoPE epilogue for one row block.
# ----------------------------------------------------------------------------
def _fused_qkv_kernel(
    x_ref,
    wqd_ref, bqd_ref, wkvd_ref, bkvd_ref,
    wqu_ref, bqu_ref, wku_ref, bku_ref, wvu_ref, bvu_ref,
    wr_ref, br_ref, wrr_ref, brr_ref,
    sin_ref, cos_ref,
    q_ref, k_ref, v_ref, rope_ref,
):
    f32 = jnp.float32
    x = x_ref[...]                                              # (tm, dim) bf16

    # Low-rank "down" projections; latents stay in VMEM (no HBM round trip).
    qd = (jnp.dot(x, wqd_ref[...], preferred_element_type=f32)
          + bqd_ref[...]).astype(jnp.bfloat16)
    lkv = (jnp.dot(x, wkvd_ref[...], preferred_element_type=f32)
           + bkvd_ref[...]).astype(jnp.bfloat16)

    # Up projections straight to bf16 outputs.
    q_ref[...] = (jnp.dot(qd, wqu_ref[...], preferred_element_type=f32)
                  + bqu_ref[...]).astype(q_ref.dtype)
    k_ref[...] = (jnp.dot(lkv, wku_ref[...], preferred_element_type=f32)
                  + bku_ref[...]).astype(k_ref.dtype)
    v_ref[...] = (jnp.dot(lkv, wvu_ref[...], preferred_element_type=f32)
                  + bvu_ref[...]).astype(v_ref.dtype)

    # Rotary projection with RoPE folded into the epilogue.
    # rotate_half(x @ W + b) == x @ W_rot + b_rot (columns pre-rotated/negated
    # on the host), so this is pure dot + mul + add — no in-kernel lane shuffles.
    y = jnp.dot(x, wr_ref[...], preferred_element_type=f32) + br_ref[...]
    y_rot = jnp.dot(x, wrr_ref[...], preferred_element_type=f32) + brr_ref[...]
    rope_ref[...] = (y * cos_ref[...] + y_rot * sin_ref[...]).astype(rope_ref.dtype)


# ----------------------------------------------------------------------------
# Fallback tiled GEMM (used only when resident weights would not fit VMEM).
# ----------------------------------------------------------------------------
def _linear_kernel(x_ref, w_ref, b_ref, o_ref):
    o_ref[...] = (jnp.dot(x_ref[...], w_ref[...], preferred_element_type=jnp.float32)
                  + b_ref[...]).astype(o_ref.dtype)


def pallas_linear(x2d, w, b, *, block_m=256, block_n=256, out_dtype=jnp.bfloat16):
    """y = x2d @ w + b (bf16 MXU operands, f32 accumulation, bf16 output).

    Grid is (col-blocks, row-blocks) with rows innermost so each weight column
    block is DMA'd from HBM exactly once (no re-streaming across the M axis).
    """
    M, K = x2d.shape
    _, O = w.shape
    tm = M if M < block_m else block_m
    tn = O if O < block_n else block_n
    grid = (pl.cdiv(O, tn), pl.cdiv(M, tm))
    # TODO(synk): for extremely large K a K-tiled accumulator (P3) would shrink
    # the whole-K blocks further; not needed at the dims exercised here.
    vmem_limit = int(min(max(2 * (2 * tm * K + 2 * K * tn + 2 * tm * tn + 4 * tn)
                             + (4 << 20), 32 << 20), 56 << 20))
    return pl.pallas_call(
        _linear_kernel,
        out_shape=jax.ShapeDtypeStruct((M, O), out_dtype),
        grid=grid,
        in_specs=[
            pl.BlockSpec((tm, K), lambda j, i: (i, 0)),
            pl.BlockSpec((K, tn), lambda j, i: (0, j)),
            pl.BlockSpec((1, tn), lambda j, i: (0, j)),
        ],
        out_specs=pl.BlockSpec((tm, tn), lambda j, i: (i, j)),
        compiler_params=pltpu.CompilerParams(
            dimension_semantics=("parallel", "parallel"),
            vmem_limit_bytes=vmem_limit,
        ),
        cost_estimate=pl.CostEstimate(
            flops=int(2 * M * K * O), transcendentals=0,
            bytes_accessed=int(2 * (M * K + K * O + M * O) + 4 * O)),
    )(x2d.astype(jnp.bfloat16), w.astype(jnp.bfloat16),
      b.reshape(1, O).astype(jnp.float32))


# ----------------------------------------------------------------------------
# Plain-JAX glue: RoPE tables, parameter init / preparation.
# ----------------------------------------------------------------------------
def rope_tables(rope_dim, seq_len):
    # TODO(synk): the PyTorch spec constructs RotaryPositionEmbedding(head_dim)
    # but applies it to the (head_dim // 2)-wide qr/kr tensors, which
    # shape-errors in PyTorch; the tables here use rope_dim = head_dim // 2
    # (the qr/kr width) so the rotary embedding is well-defined.
    half = rope_dim // 2
    pos = jnp.arange(seq_len, dtype=jnp.float32)[:, None]
    div = jnp.exp(jnp.arange(half, dtype=jnp.float32) * -(math.log(10000.0) / half))
    emb = pos * div                                               # (N, half)
    sin = jnp.concatenate([jnp.sin(emb), jnp.sin(emb)], axis=-1)  # (N, rope_dim)
    cos = jnp.concatenate([jnp.cos(emb), jnp.cos(emb)], axis=-1)
    return sin, cos


def apply_rope(x, sin, cos):
    # Used only by the pure-JAX reference.
    half = x.shape[-1] // 2
    rot = jnp.concatenate([-x[..., half:], x[..., :half]], axis=-1)
    return x * cos + rot * sin


def init_linear(key, in_dim, out_dim):
    # PyTorch nn.Linear default init: U(-1/sqrt(in), 1/sqrt(in)).
    kw, kb = jax.random.split(key)
    bound = 1.0 / math.sqrt(in_dim)
    w = jax.random.uniform(kw, (in_dim, out_dim), jnp.float32, -bound, bound)
    b = jax.random.uniform(kb, (out_dim,), jnp.float32, -bound, bound)
    return w, b


def init_params(key, hidden_dim, num_heads=8, low_rank=2):
    head_dim = hidden_dim // num_heads
    rope_dim = head_dim // 2
    lr_dim = hidden_dim // low_rank
    keys = jax.random.split(key, 7)
    return {
        "qd_proj": init_linear(keys[0], hidden_dim, lr_dim),
        "qu_proj": init_linear(keys[1], lr_dim, hidden_dim),
        "qr_proj": init_linear(keys[2], hidden_dim, rope_dim),
        "kvd": init_linear(keys[3], hidden_dim, lr_dim),
        "v_up_proj": init_linear(keys[4], lr_dim, hidden_dim),
        "k_up_proj": init_linear(keys[5], lr_dim, hidden_dim),
        "kr_proj": init_linear(keys[6], hidden_dim, rope_dim),
    }


def prepare_params(params, hidden_dim, num_heads):
    """bf16 weights, (1, O) f32 biases, plus column-rotated rotary weights so
    rotate_half can be expressed as a plain matmul inside the kernel."""
    hd = hidden_dim // num_heads
    r = hd // 2
    h = r // 2

    def cvt(wb):
        w, b = wb
        return w.astype(jnp.bfloat16), b.reshape(1, -1).astype(jnp.float32)

    wqr, bqr = params["qr_proj"]
    wkr, bkr = params["kr_proj"]

    def rot_cols(w, b):
        # rotate_half(x @ W + b) == x @ W_rot + b_rot
        return (jnp.concatenate([-w[:, h:], w[:, :h]], axis=1),
                jnp.concatenate([-b[h:], b[:h]], axis=0))

    wqr_r, bqr_r = rot_cols(wqr, bqr)
    wkr_r, bkr_r = rot_cols(wkr, bkr)

    w_rope = jnp.concatenate([wqr, wkr], axis=1)          # (dim, 2r) = [qr | kr]
    b_rope = jnp.concatenate([bqr, bkr], axis=0)
    w_rope_rot = jnp.concatenate([wqr_r, wkr_r], axis=1)
    b_rope_rot = jnp.concatenate([bqr_r, bkr_r], axis=0)

    return {
        "qd": cvt(params["qd_proj"]),
        "kvd": cvt(params["kvd"]),
        "qu": cvt(params["qu_proj"]),
        "ku": cvt(params["k_up_proj"]),
        "vu": cvt(params["v_up_proj"]),
        "rope": cvt((w_rope, b_rope)),
        "rope_rot": cvt((w_rope_rot, b_rope_rot)),
    }


# ----------------------------------------------------------------------------
# Forward: returns (q, k, v), matching AltMultiLatentQKV.forward.
# ----------------------------------------------------------------------------
def alt_multi_latent_qkv(x, prepared, num_heads=8, low_rank=2, block_m=256):
    B, N, dim = x.shape
    H = num_heads
    hd = dim // H
    r = hd // 2
    lr = dim // low_rank
    M = B * N
    x2 = x.reshape(M, dim).astype(jnp.bfloat16)

    # Per-token RoPE tables in the kernel's [qr | kr] layout (width 2r), tiled
    # over batch so a plain row-block index_map selects the right positions.
    sin_r, cos_r = rope_tables(r, N)                                   # (N, r)
    sin2 = jnp.tile(jnp.concatenate([sin_r, sin_r], axis=-1), (B, 1))  # (M, 2r)
    cos2 = jnp.tile(jnp.concatenate([cos_r, cos_r], axis=-1), (B, 1))

    tm = M if M < block_m else block_m

    # Conservative VMEM footprint of the fused (weights-resident) path,
    # assuming the pipeline double-buffers everything.
    weight_bytes = 2 * (2 * dim * lr + 3 * lr * dim + 2 * dim * 2 * r)
    bias_bytes = 4 * (2 * lr + 3 * dim + 4 * r)
    tile_bytes = 2 * tm * dim + 8 * tm * 2 * r + 2 * (3 * tm * dim + tm * 2 * r)
    est = 2 * (weight_bytes + bias_bytes + tile_bytes)
    vmem_limit = int(min(max(est + (4 << 20), 32 << 20), 56 << 20))
    use_fused = est <= (44 << 20)

    if use_fused:
        grid = (pl.cdiv(M, tm),)

        def rows(width):
            return pl.BlockSpec((tm, width), lambda i: (i, 0))

        def whole(arr):
            return pl.BlockSpec(arr.shape, lambda i: (0, 0))

        wqd, bqd = prepared["qd"]
        wkvd, bkvd = prepared["kvd"]
        wqu, bqu = prepared["qu"]
        wku, bku = prepared["ku"]
        wvu, bvu = prepared["vu"]
        wr, br = prepared["rope"]
        wrr, brr = prepared["rope_rot"]

        flops = 2 * M * dim * 2 * lr + 3 * (2 * M * lr * dim) + 2 * (2 * M * dim * 2 * r)
        bytes_accessed = (2 * M * dim + weight_bytes + bias_bytes
                          + 8 * M * 2 * r + 2 * (3 * M * dim + M * 2 * r))

        q2, k2, v2, rope = pl.pallas_call(
            _fused_qkv_kernel,
            out_shape=(
                jax.ShapeDtypeStruct((M, dim), jnp.bfloat16),      # q
                jax.ShapeDtypeStruct((M, dim), jnp.bfloat16),      # k
                jax.ShapeDtypeStruct((M, dim), jnp.bfloat16),      # v
                jax.ShapeDtypeStruct((M, 2 * r), jnp.bfloat16),    # [roped qr | kr]
            ),
            grid=grid,
            in_specs=[
                rows(dim),                                         # x
                whole(wqd), whole(bqd), whole(wkvd), whole(bkvd),
                whole(wqu), whole(bqu), whole(wku), whole(bku),
                whole(wvu), whole(bvu),
                whole(wr), whole(br), whole(wrr), whole(brr),
                rows(2 * r), rows(2 * r),                          # sin, cos
            ],
            out_specs=(rows(dim), rows(dim), rows(dim), rows(2 * r)),
            compiler_params=pltpu.CompilerParams(
                dimension_semantics=("parallel",),                 # v7x 2-TC sharding
                vmem_limit_bytes=vmem_limit,
            ),
            cost_estimate=pl.CostEstimate(
                flops=int(flops), transcendentals=0,
                bytes_accessed=int(bytes_accessed)),
        )(x2, wqd, bqd, wkvd, bkvd, wqu, bqu, wku, bku, wvu, bvu,
          wr, br, wrr, brr, sin2, cos2)
    else:
        # Weights too large to keep resident: separate tiled GEMMs, bf16
        # intermediates, weights DMA'd once per column block.
        qd = pallas_linear(x2, *prepared["qd"])
        lkv = pallas_linear(x2, *prepared["kvd"])
        q2 = pallas_linear(qd, *prepared["qu"])
        k2 = pallas_linear(lkv, *prepared["ku"])
        v2 = pallas_linear(lkv, *prepared["vu"])
        y = pallas_linear(x2, *prepared["rope"]).astype(jnp.float32)
        y_rot = pallas_linear(x2, *prepared["rope_rot"]).astype(jnp.float32)
        rope = (y * cos2 + y_rot * sin2).astype(jnp.bfloat16)

    # Final (B, H, N, *) assembly — pure layout plumbing, kept in bf16.
    # TODO(synk): for head_dim >= 128 the up-proj outputs could be written
    # head-major straight from the kernel to skip this transpose.
    q = q2.reshape(B, N, H, hd).transpose(0, 2, 1, 3)
    k = k2.reshape(B, N, H, hd).transpose(0, 2, 1, 3)
    v = v2.reshape(B, N, H, hd).transpose(0, 2, 1, 3)
    qr = jnp.broadcast_to(rope[:, :r].reshape(B, 1, N, r), (B, H, N, r))
    kr = jnp.broadcast_to(rope[:, r:].reshape(B, 1, N, r), (B, H, N, r))
    q = jnp.concatenate([q, qr], axis=-1)                 # (B, H, N, hd + r)
    k = jnp.concatenate([k, kr], axis=-1)                 # (B, H, N, hd + r)
    return q, k, v


# Pure-jnp f32 reference (un-fused projections, rope after the head broadcast,
# exactly as the PyTorch module orders it) used as the correctness check.
def reference_forward(x, params, num_heads=8):
    B, N, dim = x.shape
    hd = dim // num_heads
    r = hd // 2

    def lin(t, wb):
        w, b = wb
        return t @ w + b

    qd = lin(x, params["qd_proj"])
    q = lin(qd, params["qu_proj"]).reshape(B, N, num_heads, hd).transpose(0, 2, 1, 3)
    qr = lin(x, params["qr_proj"])
    lkv = lin(x, params["kvd"])
    k = lin(lkv, params["k_up_proj"]).reshape(B, N, num_heads, hd).transpose(0, 2, 1, 3)
    kr = lin(x, params["kr_proj"])
    v = lin(lkv, params["v_up_proj"]).reshape(B, N, num_heads, hd).transpose(0, 2, 1, 3)

    sin, cos = rope_tables(r, N)
    qr = apply_rope(jnp.broadcast_to(qr[:, None], (B, num_heads, N, r)), sin, cos)
    kr = apply_rope(jnp.broadcast_to(kr[:, None], (B, num_heads, N, r)), sin, cos)
    q = jnp.concatenate([q, qr], axis=-1)
    k = jnp.concatenate([k, kr], axis=-1)
    return q, k, v


if __name__ == "__main__":
    B, N, hidden_dim, num_heads, low_rank = 2, 8, 32, 8, 2
    head_dim = hidden_dim // num_heads

    key = jax.random.PRNGKey(0)
    kx, kp = jax.random.split(key)
    x = jax.random.normal(kx, (B, N, hidden_dim), dtype=jnp.float32)
    params = init_params(kp, hidden_dim, num_heads, low_rank)
    prepared = prepare_params(params, hidden_dim, num_heads)

    fwd = jax.jit(functools.partial(alt_multi_latent_qkv,
                                    num_heads=num_heads, low_rank=low_rank))
    q, k, v = jax.block_until_ready(fwd(x, prepared))

    q_ref, k_ref, v_ref = reference_forward(x, params, num_heads=num_heads)

    assert q.shape == (B, num_heads, N, head_dim + head_dim // 2)
    assert k.shape == (B, num_heads, N, head_dim + head_dim // 2)
    assert v.shape == (B, num_heads, N, head_dim)
    # bf16 MXU operands / bf16 outputs (f32 accumulation) vs f32 reference.
    for got, want, name in ((q, q_ref, "q"), (k, k_ref, "k"), (v, v_ref, "v")):
        assert jnp.allclose(got.astype(jnp.float32), want, atol=5e-2, rtol=5e-2), \
            f"{name} mismatch vs reference"

    print("KERNEL_OK")
</pallas_src>

<mosaic_0001>
module attributes {stable_mosaic.version = 11 : i64} {
  func.func @_fused_qkv_kernel(%arg0: i32, %arg1: memref<16x32xbf16, #tpu.memory_space<vmem>>, %arg2: memref<32x16xbf16, #tpu.memory_space<vmem>>, %arg3: memref<1x16xf32, #tpu.memory_space<vmem>>, %arg4: memref<32x16xbf16, #tpu.memory_space<vmem>>, %arg5: memref<1x16xf32, #tpu.memory_space<vmem>>, %arg6: memref<16x32xbf16, #tpu.memory_space<vmem>>, %arg7: memref<1x32xf32, #tpu.memory_space<vmem>>, %arg8: memref<16x32xbf16, #tpu.memory_space<vmem>>, %arg9: memref<1x32xf32, #tpu.memory_space<vmem>>, %arg10: memref<16x32xbf16, #tpu.memory_space<vmem>>, %arg11: memref<1x32xf32, #tpu.memory_space<vmem>>, %arg12: memref<32x4xbf16, #tpu.memory_space<vmem>>, %arg13: memref<1x4xf32, #tpu.memory_space<vmem>>, %arg14: memref<32x4xbf16, #tpu.memory_space<vmem>>, %arg15: memref<1x4xf32, #tpu.memory_space<vmem>>, %arg16: memref<16x4xf32, #tpu.memory_space<vmem>>, %arg17: memref<16x4xf32, #tpu.memory_space<vmem>>, %arg18: memref<16x32xbf16, #tpu.memory_space<vmem>>, %arg19: memref<16x32xbf16, #tpu.memory_space<vmem>>, %arg20: memref<16x32xbf16, #tpu.memory_space<vmem>>, %arg21: memref<16x4xbf16, #tpu.memory_space<vmem>>) attributes {dimension_semantics = [#tpu.dimension_semantics<parallel>], iteration_bounds = array<i64: 1>, scalar_prefetch = 0 : i64, scratch_operands = 0 : i64, tpu.core_type = #tpu.core_type<tc>, window_params = [{transform_indices = @transform_0, window_bounds = array<i64: 16, 32>}, {pipeline_mode = #tpu.pipeline_mode<synchronous>, transform_indices = @transform_1, window_bounds = array<i64: 32, 16>}, {pipeline_mode = #tpu.pipeline_mode<synchronous>, transform_indices = @transform_2, window_bounds = array<i64: 1, 16>}, {pipeline_mode = #tpu.pipeline_mode<synchronous>, transform_indices = @transform_3, window_bounds = array<i64: 32, 16>}, {pipeline_mode = #tpu.pipeline_mode<synchronous>, transform_indices = @transform_4, window_bounds = array<i64: 1, 16>}, {pipeline_mode = #tpu.pipeline_mode<synchronous>, transform_indices = @transform_5, window_bounds = array<i64: 16, 32>}, {pipeline_mode = #tpu.pipeline_mode<synchronous>, transform_indices = @transform_6, window_bounds = array<i64: 1, 32>}, {pipeline_mode = #tpu.pipeline_mode<synchronous>, transform_indices = @transform_7, window_bounds = array<i64: 16, 32>}, {pipeline_mode = #tpu.pipeline_mode<synchronous>, transform_indices = @transform_8, window_bounds = array<i64: 1, 32>}, {pipeline_mode = #tpu.pipeline_mode<synchronous>, transform_indices = @transform_9, window_bounds = array<i64: 16, 32>}, {pipeline_mode = #tpu.pipeline_mode<synchronous>, transform_indices = @transform_10, window_bounds = array<i64: 1, 32>}, {pipeline_mode = #tpu.pipeline_mode<synchronous>, transform_indices = @transform_11, window_bounds = array<i64: 32, 4>}, {pipeline_mode = #tpu.pipeline_mode<synchronous>, transform_indices = @transform_12, window_bounds = array<i64: 1, 4>}, {pipeline_mode = #tpu.pipeline_mode<synchronous>, transform_indices = @transform_13, window_bounds = array<i64: 32, 4>}, {pipeline_mode = #tpu.pipeline_mode<synchronous>, transform_indices = @transform_14, window_bounds = array<i64: 1, 4>}, {transform_indices = @transform_15, window_bounds = array<i64: 16, 4>}, {transform_indices = @transform_16, window_bounds = array<i64: 16, 4>}, {transform_indices = @transform_17, window_bounds = array<i64: 16, 32>}, {transform_indices = @transform_18, window_bounds = array<i64: 16, 32>}, {transform_indices = @transform_19, window_bounds = array<i64: 16, 32>}, {transform_indices = @transform_20, window_bounds = array<i64: 16, 4>}]} {
    %c0 = arith.constant 0 : index
    %c0_0 = arith.constant 0 : index
    %0 = vector.load %arg1[%c0, %c0_0] : memref<16x32xbf16, #tpu.memory_space<vmem>>, vector<16x32xbf16>
    %c0_1 = arith.constant 0 : index
    %c0_2 = arith.constant 0 : index
    %1 = vector.load %arg2[%c0_1, %c0_2] : memref<32x16xbf16, #tpu.memory_space<vmem>>, vector<32x16xbf16>
    %cst = arith.constant dense<0.000000e+00> : vector<16x16xf32>
    %2 = tpu.matmul %0, %1, %cst {dimension_numbers = #tpu.dot_dimension_numbers<[1], [0], [0], [1], [0, 0, 1, 1], [], []>} : vector<16x32xbf16>, vector<32x16xbf16>, vector<16x16xf32> -> vector<16x16xf32>
    %c0_3 = arith.constant 0 : index
    %c0_4 = arith.constant 0 : index
    %3 = vector.load %arg3[%c0_3, %c0_4] : memref<1x16xf32, #tpu.memory_space<vmem>>, vector<1x16xf32>
    %4 = vector.broadcast %3 : vector<1x16xf32> to vector<16x16xf32>
    %5 = arith.addf %2, %4 : vector<16x16xf32>
    %6 = arith.truncf %5 : vector<16x16xf32> to vector<16x16xbf16>
    %c0_5 = arith.constant 0 : index
    %c0_6 = arith.constant 0 : index
    %7 = vector.load %arg4[%c0_5, %c0_6] : memref<32x16xbf16, #tpu.memory_space<vmem>>, vector<32x16xbf16>
    %cst_7 = arith.constant dense<0.000000e+00> : vector<16x16xf32>
    %8 = tpu.matmul %0, %7, %cst_7 {dimension_numbers = #tpu.dot_dimension_numbers<[1], [0], [0], [1], [0, 0, 1, 1], [], []>} : vector<16x32xbf16>, vector<32x16xbf16>, vector<16x16xf32> -> vector<16x16xf32>
    %c0_8 = arith.constant 0 : index
    %c0_9 = arith.constant 0 : index
    %9 = vector.load %arg5[%c0_8, %c0_9] : memref<1x16xf32, #tpu.memory_space<vmem>>, vector<1x16xf32>
    %10 = vector.broadcast %9 : vector<1x16xf32> to vector<16x16xf32>
    %11 = arith.addf %8, %10 : vector<16x16xf32>
    %12 = arith.truncf %11 : vector<16x16xf32> to vector<16x16xbf16>
    %c0_10 = arith.constant 0 : index
    %c0_11 = arith.constant 0 : index
    %13 = vector.load %arg6[%c0_10, %c0_11] : memref<16x32xbf16, #tpu.memory_space<vmem>>, vector<16x32xbf16>
    %cst_12 = arith.constant dense<0.000000e+00> : vector<16x32xf32>
    %14 = tpu.matmul %6, %13, %cst_12 {dimension_numbers = #tpu.dot_dimension_numbers<[1], [0], [0], [1], [0, 0, 1, 1], [], []>} : vector<16x16xbf16>, vector<16x32xbf16>, vector<16x32xf32> -> vector<16x32xf32>
    %c0_13 = arith.constant 0 : index
    %c0_14 = arith.constant 0 : index
    %15 = vector.load %arg7[%c0_13, %c0_14] : memref<1x32xf32, #tpu.memory_space<vmem>>, vector<1x32xf32>
    %16 = vector.broadcast %15 : vector<1x32xf32> to vector<16x32xf32>
    %17 = arith.addf %14, %16 : vector<16x32xf32>
    %18 = arith.truncf %17 : vector<16x32xf32> to vector<16x32xbf16>
    %c0_15 = arith.constant 0 : index
    %c0_16 = arith.constant 0 : index
    %19 = vector.load %arg18[%c0_15, %c0_16] : memref<16x32xbf16, #tpu.memory_space<vmem>>, vector<16x32xbf16>
    tpu.vector_store %arg18[%c0_15, %c0_16], %18 {strides = array<i32>} : memref<16x32xbf16, #tpu.memory_space<vmem>>, vector<16x32xbf16>,
    %c0_17 = arith.constant 0 : index
    %c0_18 = arith.constant 0 : index
    %20 = vector.load %arg8[%c0_17, %c0_18] : memref<16x32xbf16, #tpu.memory_space<vmem>>, vector<16x32xbf16>
    %cst_19 = arith.constant dense<0.000000e+00> : vector<16x32xf32>
    %21 = tpu.matmul %12, %20, %cst_19 {dimension_numbers = #tpu.dot_dimension_numbers<[1], [0], [0], [1], [0, 0, 1, 1], [], []>} : vector<16x16xbf16>, vector<16x32xbf16>, vector<16x32xf32> -> vector<16x32xf32>
    %c0_20 = arith.constant 0 : index
    %c0_21 = arith.constant 0 : index
    %22 = vector.load %arg9[%c0_20, %c0_21] : memref<1x32xf32, #tpu.memory_space<vmem>>, vector<1x32xf32>
    %23 = vector.broadcast %22 : vector<1x32xf32> to vector<16x32xf32>
    %24 = arith.addf %21, %23 : vector<16x32xf32>
    %25 = arith.truncf %24 : vector<16x32xf32> to vector<16x32xbf16>
    %c0_22 = arith.constant 0 : index
    %c0_23 = arith.constant 0 : index
    %26 = vector.load %arg19[%c0_22, %c0_23] : memref<16x32xbf16, #tpu.memory_space<vmem>>, vector<16x32xbf16>
    tpu.vector_store %arg19[%c0_22, %c0_23], %25 {strides = array<i32>} : memref<16x32xbf16, #tpu.memory_space<vmem>>, vector<16x32xbf16>,
    %c0_24 = arith.constant 0 : index
    %c0_25 = arith.constant 0 : index
    %27 = vector.load %arg10[%c0_24, %c0_25] : memref<16x32xbf16, #tpu.memory_space<vmem>>, vector<16x32xbf16>
    %cst_26 = arith.constant dense<0.000000e+00> : vector<16x32xf32>
    %28 = tpu.matmul %12, %27, %cst_26 {dimension_numbers = #tpu.dot_dimension_numbers<[1], [0], [0], [1], [0, 0, 1, 1], [], []>} : vector<16x16xbf16>, vector<16x32xbf16>, vector<16x32xf32> -> vector<16x32xf32>
    %c0_27 = arith.constant 0 : index
    %c0_28 = arith.constant 0 : index
    %29 = vector.load %arg11[%c0_27, %c0_28] : memref<1x32xf32, #tpu.memory_space<vmem>>, vector<1x32xf32>
    %30 = vector.broadcast %29 : vector<1x32xf32> to vector<16x32xf32>
    %31 = arith.addf %28, %30 : vector<16x32xf32>
    %32 = arith.truncf %31 : vector<16x32xf32> to vector<16x32xbf16>
    %c0_29 = arith.constant 0 : index
    %c0_30 = arith.constant 0 : index
    %33 = vector.load %arg20[%c0_29, %c0_30] : memref<16x32xbf16, #tpu.memory_space<vmem>>, vector<16x32xbf16>
    tpu.vector_store %arg20[%c0_29, %c0_30], %32 {strides = array<i32>} : memref<16x32xbf16, #tpu.memory_space<vmem>>, vector<16x32xbf16>,
    %c0_31 = arith.constant 0 : index
    %c0_32 = arith.constant 0 : index
    %34 = vector.load %arg12[%c0_31, %c0_32] : memref<32x4xbf16, #tpu.memory_space<vmem>>, vector<32x4xbf16>
    %cst_33 = arith.constant dense<0.000000e+00> : vector<16x4xf32>
    %35 = tpu.matmul %0, %34, %cst_33 {dimension_numbers = #tpu.dot_dimension_numbers<[1], [0], [0], [1], [0, 0, 1, 1], [], []>} : vector<16x32xbf16>, vector<32x4xbf16>, vector<16x4xf32> -> vector<16x4xf32>
    %c0_34 = arith.constant 0 : index
    %c0_35 = arith.constant 0 : index
    %36 = vector.load %arg13[%c0_34, %c0_35] : memref<1x4xf32, #tpu.memory_space<vmem>>, vector<1x4xf32>
    %37 = vector.broadcast %36 : vector<1x4xf32> to vector<16x4xf32>
    %38 = arith.addf %35, %37 : vector<16x4xf32>
    %c0_36 = arith.constant 0 : index
    %c0_37 = arith.constant 0 : index
    %39 = vector.load %arg14[%c0_36, %c0_37] : memref<32x4xbf16, #tpu.memory_space<vmem>>, vector<32x4xbf16>
    %cst_38 = arith.constant dense<0.000000e+00> : vector<16x4xf32>
    %40 = tpu.matmul %0, %39, %cst_38 {dimension_numbers = #tpu.dot_dimension_numbers<[1], [0], [0], [1], [0, 0, 1, 1], [], []>} : vector<16x32xbf16>, vector<32x4xbf16>, vector<16x4xf32> -> vector<16x4xf32>
    %c0_39 = arith.constant 0 : index
    %c0_40 = arith.constant 0 : index
    %41 = vector.load %arg15[%c0_39, %c0_40] : memref<1x4xf32, #tpu.memory_space<vmem>>, vector<1x4xf32>
    %42 = vector.broadcast %41 : vector<1x4xf32> to vector<16x4xf32>
    %43 = arith.addf %40, %42 : vector<16x4xf32>
    %c0_41 = arith.constant 0 : index
    %c0_42 = arith.constant 0 : index
    %44 = vector.load %arg17[%c0_41, %c0_42] : memref<16x4xf32, #tpu.memory_space<vmem>>, vector<16x4xf32>
    %45 = arith.mulf %38, %44 : vector<16x4xf32>
    %c0_43 = arith.constant 0 : index
    %c0_44 = arith.constant 0 : index
    %46 = vector.load %arg16[%c0_43, %c0_44] : memref<16x4xf32, #tpu.memory_space<vmem>>, vector<16x4xf32>
    %47 = arith.mulf %43, %46 : vector<16x4xf32>
    %48 = arith.addf %45, %47 : vector<16x4xf32>
    %49 = arith.truncf %48 : vector<16x4xf32> to vector<16x4xbf16>
    %c0_45 = arith.constant 0 : index
    %c0_46 = arith.constant 0 : index
    %50 = vector.load %arg21[%c0_45, %c0_46] : memref<16x4xbf16, #tpu.memory_space<vmem>>, vector<16x4xbf16>
    tpu.vector_store %arg21[%c0_45, %c0_46], %49 {strides = array<i32>} : memref<16x4xbf16, #tpu.memory_space<vmem>>, vector<16x4xbf16>,
    return
  }
  func.func @transform_0(%arg0: i32) -> (i32, i32) {
    %c0_i32 = arith.constant 0 : i32
    %c0_i32_0 = arith.constant 0 : i32
    return %arg0, %c0_i32 : i32, i32
  }
  func.func @transform_1(%arg0: i32) -> (i32, i32) {
    %c0_i32 = arith.constant 0 : i32
    %c0_i32_0 = arith.constant 0 : i32
    %c0_i32_1 = arith.constant 0 : i32
    return %c0_i32, %c0_i32_0 : i32, i32
  }
  func.func @transform_2(%arg0: i32) -> (i32, i32) {
    %c0_i32 = arith.constant 0 : i32
    %c0_i32_0 = arith.constant 0 : i32
    %c0_i32_1 = arith.constant 0 : i32
    return %c0_i32, %c0_i32_0 : i32, i32
  }
  func.func @transform_3(%arg0: i32) -> (i32, i32) {
    %c0_i32 = arith.constant 0 : i32
    %c0_i32_0 = arith.constant 0 : i32
    %c0_i32_1 = arith.constant 0 : i32
    return %c0_i32, %c0_i32_0 : i32, i32
  }
  func.func @transform_4(%arg0: i32) -> (i32, i32) {
    %c0_i32 = arith.constant 0 : i32
    %c0_i32_0 = arith.constant 0 : i32
    %c0_i32_1 = arith.constant 0 : i32
    return %c0_i32, %c0_i32_0 : i32, i32
  }
  func.func @transform_5(%arg0: i32) -> (i32, i32) {
    %c0_i32 = arith.constant 0 : i32
    %c0_i32_0 = arith.constant 0 : i32
    %c0_i32_1 = arith.constant 0 : i32
    return %c0_i32, %c0_i32_0 : i32, i32
  }
  func.func @transform_6(%arg0: i32) -> (i32, i32) {
    %c0_i32 = arith.constant 0 : i32
    %c0_i32_0 = arith.constant 0 : i32
    %c0_i32_1 = arith.constant 0 : i32
    return %c0_i32, %c0_i32_0 : i32, i32
  }
  func.func @transform_7(%arg0: i32) -> (i32, i32) {
    %c0_i32 = arith.constant 0 : i32
    %c0_i32_0 = arith.constant 0 : i32
    %c0_i32_1 = arith.constant 0 : i32
    return %c0_i32, %c0_i32_0 : i32, i32
  }
  func.func @transform_8(%arg0: i32) -> (i32, i32) {
    %c0_i32 = arith.constant 0 : i32
    %c0_i32_0 = arith.constant 0 : i32
    %c0_i32_1 = arith.constant 0 : i32
    return %c0_i32, %c0_i32_0 : i32, i32
  }
  func.func @transform_9(%arg0: i32) -> (i32, i32) {
    %c0_i32 = arith.constant 0 : i32
    %c0_i32_0 = arith.constant 0 : i32
    %c0_i32_1 = arith.constant 0 : i32
    return %c0_i32, %c0_i32_0 : i32, i32
  }
  func.func @transform_10(%arg0: i32) -> (i32, i32) {
    %c0_i32 = arith.constant 0 : i32
    %c0_i32_0 = arith.constant 0 : i32
    %c0_i32_1 = arith.constant 0 : i32
    return %c0_i32, %c0_i32_0 : i32, i32
  }
  func.func @transform_11(%arg0: i32) -> (i32, i32) {
    %c0_i32 = arith.constant 0 : i32
    %c0_i32_0 = arith.constant 0 : i32
    %c0_i32_1 = arith.constant 0 : i32
    return %c0_i32, %c0_i32_0 : i32, i32
  }
  func.func @transform_12(%arg0: i32) -> (i32, i32) {
    %c0_i32 = arith.constant 0 : i32
    %c0_i32_0 = arith.constant 0 : i32
    %c0_i32_1 = arith.constant 0 : i32
    return %c0_i32, %c0_i32_0 : i32, i32
  }
  func.func @transform_13(%arg0: i32) -> (i32, i32) {
    %c0_i32 = arith.constant 0 : i32
    %c0_i32_0 = arith.constant 0 : i32
    %c0_i32_1 = arith.constant 0 : i32
    return %c0_i32, %c0_i32_0 : i32, i32
  }
  func.func @transform_14(%arg0: i32) -> (i32, i32) {
    %c0_i32 = arith.constant 0 : i32
    %c0_i32_0 = arith.constant 0 : i32
    %c0_i32_1 = arith.constant 0 : i32
    return %c0_i32, %c0_i32_0 : i32, i32
  }
  func.func @transform_15(%arg0: i32) -> (i32, i32) {
    %c0_i32 = arith.constant 0 : i32
    %c0_i32_0 = arith.constant 0 : i32
    return %arg0, %c0_i32 : i32, i32
  }
  func.func @transform_16(%arg0: i32) -> (i32, i32) {
    %c0_i32 = arith.constant 0 : i32
    %c0_i32_0 = arith.constant 0 : i32
    return %arg0, %c0_i32 : i32, i32
  }
  func.func @transform_17(%arg0: i32) -> (i32, i32) {
    %c0_i32 = arith.constant 0 : i32
    %c0_i32_0 = arith.constant 0 : i32
    return %arg0, %c0_i32 : i32, i32
  }
  func.func @transform_18(%arg0: i32) -> (i32, i32) {
    %c0_i32 = arith.constant 0 : i32
    %c0_i32_0 = arith.constant 0 : i32
    return %arg0, %c0_i32 : i32, i32
  }
  func.func @transform_19(%arg0: i32) -> (i32, i32) {
    %c0_i32 = arith.constant 0 : i32
    %c0_i32_0 = arith.constant 0 : i32
    return %arg0, %c0_i32 : i32, i32
  }
  func.func @transform_20(%arg0: i32) -> (i32, i32) {
    %c0_i32 = arith.constant 0 : i32
    %c0_i32_0 = arith.constant 0 : i32
    return %arg0, %c0_i32 : i32, i32
  }
}

</mosaic_0001>

<llo_original>
// kernel: alt_multi_latent_qkv.1
$region0: #{alt_multi_latent_qkv.1}
  #allocation0 [shape = 'u32[]', space=smem, size = 0x4, offset = 0x4, fixed_abs, tag = 'smem constant byte address 0x4 - core index']
  #allocation1 [shape = 'u32[72,128]{1,0:T(1,128)}', space=vmem, size = 0x9000, scoped, tag = 'internal scratch']
  %s0 = inlined_call_operand.vmem [shape: bf16[16,32], index: 0, kind: input, shape index: {}]
  %s1 = inlined_call_operand.vmem [shape: bf16[32,16], index: 1, kind: input, shape index: {}]
  %s2 = inlined_call_operand.vmem [shape: f32[1,16], index: 2, kind: input, shape index: {}]
  %s3 = inlined_call_operand.vmem [shape: bf16[32,16], index: 3, kind: input, shape index: {}]
  %s4 = inlined_call_operand.vmem [shape: f32[1,16], index: 4, kind: input, shape index: {}]
  %s5 = inlined_call_operand.vmem [shape: bf16[16,32], index: 5, kind: input, shape index: {}]
  %s6 = inlined_call_operand.vmem [shape: f32[1,32], index: 6, kind: input, shape index: {}]
  %s7 = inlined_call_operand.vmem [shape: bf16[16,32], index: 7, kind: input, shape index: {}]
  %s8 = inlined_call_operand.vmem [shape: f32[1,32], index: 8, kind: input, shape index: {}]
  %s9 = inlined_call_operand.vmem [shape: bf16[16,32], index: 9, kind: input, shape index: {}]
  %s10 = inlined_call_operand.vmem [shape: f32[1,32], index: 10, kind: input, shape index: {}]
  %s11 = inlined_call_operand.vmem [shape: bf16[32,4], index: 11, kind: input, shape index: {}]
  %s12 = inlined_call_operand.vmem [shape: f32[1,4], index: 12, kind: input, shape index: {}]
  %s13 = inlined_call_operand.vmem [shape: bf16[32,4], index: 13, kind: input, shape index: {}]
  %s14 = inlined_call_operand.vmem [shape: f32[1,4], index: 14, kind: input, shape index: {}]
  %s15 = inlined_call_operand.vmem [shape: f32[16,4], index: 15, kind: input, shape index: {}]
  %s16 = inlined_call_operand.vmem [shape: f32[16,4], index: 16, kind: input, shape index: {}]
  %s17 = inlined_call_operand.vmem [shape: bf16[16,32], index: 17, kind: output, shape index: {0}]
  %s18 = inlined_call_operand.vmem [shape: bf16[16,32], index: 18, kind: output, shape index: {1}]
  %s19 = inlined_call_operand.vmem [shape: bf16[16,32], index: 19, kind: output, shape index: {2}]
  %s20 = inlined_call_operand.vmem [shape: bf16[16,4], index: 20, kind: output, shape index: {3}]
  %21 = xla_tuple %s17, %s18, %s19, %s20
  %s22 = sld [smem:[#allocation0]]
  $region102: #{alt_multi_latent_qkv.1} parent=0
    _
  %s24 = ssub.s32 1, %s22
  %s25 = scalar_select 0, %s24, %s22
  // Predicated region
  $region2: #{alt_multi_latent_qkv.1} parent=0 // pred_check
    _
  $region3: #{alt_multi_latent_qkv.1} parent=0 // pred_check_branch
    %27 = sbr.rel (0) target = $region5
  $region4: #{alt_multi_latent_qkv.1} parent=0 // pred_region
    _
  $region5: #{alt_multi_latent_qkv.1} parent=0 // pred_fallthru
    _
  // Predicated region
  $region6: #{alt_multi_latent_qkv.1} parent=0 // pred_check
    _
  $region7: #{alt_multi_latent_qkv.1} parent=0 // pred_check_branch
    %29 = sbr.rel (0) target = $region9
  $region8: #{alt_multi_latent_qkv.1} parent=0 // pred_region
    _
  $region9: #{alt_multi_latent_qkv.1} parent=0 // pred_fallthru
    _
  // Predicated region
  $region10: #{alt_multi_latent_qkv.1} parent=0 // pred_check
    _
  $region11: #{alt_multi_latent_qkv.1} parent=0 // pred_check_branch
    %31 = sbr.rel (0) target = $region13
  $region12: #{alt_multi_latent_qkv.1} parent=0 // pred_region
    _
  $region13: #{alt_multi_latent_qkv.1} parent=0 // pred_fallthru
    _
  // Predicated region
  $region14: #{alt_multi_latent_qkv.1} parent=0 // pred_check
    _
  $region15: #{alt_multi_latent_qkv.1} parent=0 // pred_check_branch
    %33 = sbr.rel (0) target = $region17
  $region16: #{alt_multi_latent_qkv.1} parent=0 // pred_region
    _
  $region17: #{alt_multi_latent_qkv.1} parent=0 // pred_fallthru
    _
  // Predicated region
  $region18: #{alt_multi_latent_qkv.1} parent=0 // pred_check
    _
  $region19: #{alt_multi_latent_qkv.1} parent=0 // pred_check_branch
    %35 = sbr.rel (0) target = $region21
  $region20: #{alt_multi_latent_qkv.1} parent=0 // pred_region
    _
  $region21: #{alt_multi_latent_qkv.1} parent=0 // pred_fallthru
    _
  // Predicated region
  $region22: #{alt_multi_latent_qkv.1} parent=0 // pred_check
    _
  $region23: #{alt_multi_latent_qkv.1} parent=0 // pred_check_branch
    %37 = sbr.rel (0) target = $region25
  $region24: #{alt_multi_latent_qkv.1} parent=0 // pred_region
    _
  $region25: #{alt_multi_latent_qkv.1} parent=0 // pred_fallthru
    _
  // Predicated region
  $region26: #{alt_multi_latent_qkv.1} parent=0 // pred_check
    _
  $region27: #{alt_multi_latent_qkv.1} parent=0 // pred_check_branch
    %39 = sbr.rel (0) target = $region29
  $region28: #{alt_multi_latent_qkv.1} parent=0 // pred_region
    _
  $region29: #{alt_multi_latent_qkv.1} parent=0 // pred_fallthru
    _
  // Predicated region
  $region30: #{alt_multi_latent_qkv.1} parent=0 // pred_check
    _
  $region31: #{alt_multi_latent_qkv.1} parent=0 // pred_check_branch
    %41 = sbr.rel (0) target = $region33
  $region32: #{alt_multi_latent_qkv.1} parent=0 // pred_region
    _
  $region33: #{alt_multi_latent_qkv.1} parent=0 // pred_fallthru
    _
  // Predicated region
  $region34: #{alt_multi_latent_qkv.1} parent=0 // pred_check
    _
  $region35: #{alt_multi_latent_qkv.1} parent=0 // pred_check_branch
    %43 = sbr.rel (0) target = $region37
  $region36: #{alt_multi_latent_qkv.1} parent=0 // pred_region
    _
  $region37: #{alt_multi_latent_qkv.1} parent=0 // pred_fallthru
    _
  // Predicated region
  $region38: #{alt_multi_latent_qkv.1} parent=0 // pred_check
    _
  $region39: #{alt_multi_latent_qkv.1} parent=0 // pred_check_branch
    %45 = sbr.rel (0) target = $region41
  $region40: #{alt_multi_latent_qkv.1} parent=0 // pred_region
    _
  $region41: #{alt_multi_latent_qkv.1} parent=0 // pred_fallthru
    _
  // Predicated region
  $region42: #{alt_multi_latent_qkv.1} parent=0 // pred_check
    _
  $region43: #{alt_multi_latent_qkv.1} parent=0 // pred_check_branch
    %47 = sbr.rel (0) target = $region45
  $region44: #{alt_multi_latent_qkv.1} parent=0 // pred_region
    _
  $region45: #{alt_multi_latent_qkv.1} parent=0 // pred_fallthru
    _
  // Predicated region
  $region46: #{alt_multi_latent_qkv.1} parent=0 // pred_check
    _
  $region47: #{alt_multi_latent_qkv.1} parent=0 // pred_check_branch
    %49 = sbr.rel (0) target = $region49
  $region48: #{alt_multi_latent_qkv.1} parent=0 // pred_region
    _
  $region49: #{alt_multi_latent_qkv.1} parent=0 // pred_fallthru
    _
  // Predicated region
  $region50: #{alt_multi_latent_qkv.1} parent=0 // pred_check
    _
  $region51: #{alt_multi_latent_qkv.1} parent=0 // pred_check_branch
    %51 = sbr.rel (0) target = $region53
  $region52: #{alt_multi_latent_qkv.1} parent=0 // pred_region
    _
  $region53: #{alt_multi_latent_qkv.1} parent=0 // pred_fallthru
    _
  // Predicated region
  $region54: #{alt_multi_latent_qkv.1} parent=0 // pred_check
    _
  $region55: #{alt_multi_latent_qkv.1} parent=0 // pred_check_branch
    %53 = sbr.rel (0) target = $region57
  $region56: #{alt_multi_latent_qkv.1} parent=0 // pred_region
    _
  $region57: #{alt_multi_latent_qkv.1} parent=0 // pred_fallthru
    _
  // Predicated region
  $region58: #{alt_multi_latent_qkv.1} parent=0 // pred_check
    _
  $region59: #{alt_multi_latent_qkv.1} parent=0 // pred_check_branch
    %55 = sbr.rel (0) target = $region61
  $region60: #{alt_multi_latent_qkv.1} parent=0 // pred_region
    _
  $region61: #{alt_multi_latent_qkv.1} parent=0 // pred_fallthru
    _
  // Predicated region
  $region62: #{alt_multi_latent_qkv.1} parent=0 // pred_check
    _
  $region63: #{alt_multi_latent_qkv.1} parent=0 // pred_check_branch
    %57 = sbr.rel (0) target = $region65
  $region64: #{alt_multi_latent_qkv.1} parent=0 // pred_region
    _
  $region65: #{alt_multi_latent_qkv.1} parent=0 // pred_fallthru
    _
  // Predicated region
  $region66: #{alt_multi_latent_qkv.1} parent=0 // pred_check
    _
  $region67: #{alt_multi_latent_qkv.1} parent=0 // pred_check_branch
    %59 = sbr.rel (0) target = $region69
  $region68: #{alt_multi_latent_qkv.1} parent=0 // pred_region
    _
  $region69: #{alt_multi_latent_qkv.1} parent=0 // pred_fallthru
    _
  %v61 = vld [vmem:[%s0] sm:$0xf]
  %v62 = vld [vmem:[%s0 + $0x4] sm:$0xf]
  %v63 = vld [vmem:[%s1] sm:$0xf]
  %v64 = vld [vmem:[%s1 + $0x4] sm:$0xf]
  %v65 = vld [vmem:[%s1 + $0x8] sm:$0xf]
  %v66 = vld [vmem:[%s1 + $0xc] sm:$0xf]
  %v67 = vld [vmem:[%s2] sm:$0x1]
  %v69 = vperm.slane %v67, 0
  %v73 = vunpack.c.l.b16 %v61
  %v74 = vunpack.c.l.b16 %v62
  %v75 = vpack.c.b16 %v74, %v73
  %v80 = vunpack.c.l.b16 %v63
  %v81 = vunpack.c.l.b16 %v64
  %v82 = vunpack.c.l.b16 %v65
  %v83 = vunpack.c.l.b16 %v66
  %v84 = vpack.c.b16 %v81, %v80
  %v85 = vpack.c.b16 %v83, %v82
  %vm88 = vcmask 261120
  %v90 = vsel %vm88, %v75, 0
  %92 = vmatpush.bf16.msra.mxu0 0
  %93 = vmatpush.bf16.msra.mxu0 0
  %94 = vmatpush.bf16.msra.mxu0 0
  %95 = vmatpush.bf16.msra.mxu0 0
  %96 = vmatpush.bf16.msra.mxu0 0
  %97 = vmatpush.bf16.msra.mxu0 0
  %98 = vmatpush.bf16.msra.mxu0 %v85
  %99 = vmatpush.bf16.msra.mxu0 %v84
  %100 = vmatmul.bf16.gmra.mxu0 %v90
  %v101 = vpop.f32.mrf.mxu0
  %v102 = vadd.f32 %v69, %v101
  %v103 = vpop.f32.mrf.mxu0
  %v104 = vadd.f32 %v69, %v103
  %105 = vdwg.mxu0
  %v106 = vpack.c.bf16 %v104, %v102
  %v107 = vld [vmem:[%s3] sm:$0xf]
  %v108 = vld [vmem:[%s3 + $0x4] sm:$0xf]
  %v109 = vld [vmem:[%s3 + $0x8] sm:$0xf]
  %v110 = vld [vmem:[%s3 + $0xc] sm:$0xf]
  %v111 = vld [vmem:[%s4] sm:$0x1]
  %v113 = vperm.slane %v111, 0
  %v119 = vunpack.c.l.b16 %v107
  %v120 = vunpack.c.l.b16 %v108
  %v121 = vunpack.c.l.b16 %v109
  %v122 = vunpack.c.l.b16 %v110
  %v123 = vpack.c.b16 %v120, %v119
  %v124 = vpack.c.b16 %v122, %v121
  %127 = vmatpush.bf16.msra.mxu0 0
  %128 = vmatpush.bf16.msra.mxu0 0
  %129 = vmatpush.bf16.msra.mxu0 0
  %130 = vmatpush.bf16.msra.mxu0 0
  %131 = vmatpush.bf16.msra.mxu0 0
  %132 = vmatpush.bf16.msra.mxu0 0
  %133 = vmatpush.bf16.msra.mxu0 %v124
  %134 = vmatpush.bf16.msra.mxu0 %v123
  %135 = vmatmul.bf16.gmra.mxu0 %v90
  %v136 = vpop.f32.mrf.mxu0
  %v137 = vadd.f32 %v113, %v136
  %v138 = vpop.f32.mrf.mxu0
  %v139 = vadd.f32 %v113, %v138
  %140 = vdwg.mxu0
  %v141 = vpack.c.bf16 %v139, %v137
  %v142 = vld [vmem:[%s5] sm:$0xf]
  %v143 = vld [vmem:[%s5 + $0x4] sm:$0xf]
  %v144 = vld [vmem:[%s6] sm:$0x1]
  %v146 = vperm.slane %v144, 0
  %v150 = vunpack.c.l.b16 %v142
  %v151 = vunpack.c.l.b16 %v143
  %v152 = vpack.c.b16 %v151, %v150
  %vm154 = vcmask 130048
  %v156 = vsel %vm154, %v106, 0
  %158 = vmatpush.bf16.msra.mxu0 0
  %159 = vmatpush.bf16.msra.mxu0 0
  %160 = vmatpush.bf16.msra.mxu0 0
  %161 = vmatpush.bf16.msra.mxu0 0
  %162 = vmatpush.bf16.msra.mxu0 0
  %163 = vmatpush.bf16.msra.mxu0 0
  %164 = vmatpush.bf16.msra.mxu0 0
  %165 = vmatpush.bf16.msra.mxu0 %v152
  %166 = vmatmul.bf16.gmra.mxu0 %v156
  %v167 = vpop.f32.mrf.mxu0
  %v168 = vadd.f32 %v146, %v167
  %v169 = vpop.f32.mrf.mxu0
  %v170 = vadd.f32 %v146, %v169
  %171 = vdwg.mxu0
  %v172 = vpack.c.bf16 %v168, %v168
  %v173 = vpack.c.bf16 %v170, %v170
  %vm174 = vcmask 257024
  %175 = vst.msk [vmem:[%s17] sm:$0xf] %vm174, %v172
  %176 = vst.msk [vmem:[%s17 + $0x4] sm:$0xf] %vm174, %v173
  %v177 = vld [vmem:[%s7] sm:$0xf]
  %v178 = vld [vmem:[%s7 + $0x4] sm:$0xf]
  %v179 = vld [vmem:[%s8] sm:$0x1]
  %v181 = vperm.slane %v179, 0
  %v185 = vunpack.c.l.b16 %v177
  %v186 = vunpack.c.l.b16 %v178
  %v187 = vpack.c.b16 %v186, %v185
  %v190 = vsel %vm154, %v141, 0
  %192 = vmatpush.bf16.msra.mxu0 0
  %193 = vmatpush.bf16.msra.mxu0 0
  %194 = vmatpush.bf16.msra.mxu0 0
  %195 = vmatpush.bf16.msra.mxu0 0
  %196 = vmatpush.bf16.msra.mxu0 0
  %197 = vmatpush.bf16.msra.mxu0 0
  %198 = vmatpush.bf16.msra.mxu0 0
  %199 = vmatpush.bf16.msra.mxu0 %v187
  %200 = vmatmul.bf16.gmra.mxu0 %v190
  %v201 = vpop.f32.mrf.mxu0
  %v202 = vadd.f32 %v181, %v201
  %v203 = vpop.f32.mrf.mxu0
  %v204 = vadd.f32 %v181, %v203
  %205 = vdwg.mxu0
  %v206 = vpack.c.bf16 %v202, %v202
  %v207 = vpack.c.bf16 %v204, %v204
  %208 = vst.msk [vmem:[%s18] sm:$0xf] %vm174, %v206
  %209 = vst.msk [vmem:[%s18 + $0x4] sm:$0xf] %vm174, %v207
  %v210 = vld [vmem:[%s9] sm:$0xf]
  %v211 = vld [vmem:[%s9 + $0x4] sm:$0xf]
  %v212 = vld [vmem:[%s10] sm:$0x1]
  %v214 = vperm.slane %v212, 0
  %v218 = vunpack.c.l.b16 %v210
  %v219 = vunpack.c.l.b16 %v211
  %v220 = vpack.c.b16 %v219, %v218
  %222 = vmatpush.bf16.msra.mxu0 0
  %223 = vmatpush.bf16.msra.mxu0 0
  %224 = vmatpush.bf16.msra.mxu0 0
  %225 = vmatpush.bf16.msra.mxu0 0
  %226 = vmatpush.bf16.msra.mxu0 0
  %227 = vmatpush.bf16.msra.mxu0 0
  %228 = vmatpush.bf16.msra.mxu0 0
  %229 = vmatpush.bf16.msra.mxu0 %v220
  %230 = vmatmul.bf16.gmra.mxu0 %v190
  %v231 = vpop.f32.mrf.mxu0
  %v232 = vadd.f32 %v214, %v231
  %v233 = vpop.f32.mrf.mxu0
  %v234 = vadd.f32 %v214, %v233
  %235 = vdwg.mxu0
  %v236 = vpack.c.bf16 %v232, %v232
  %v237 = vpack.c.bf16 %v234, %v234
  %238 = vst.msk [vmem:[%s19] sm:$0xf] %vm174, %v236
  %239 = vst.msk [vmem:[%s19 + $0x4] sm:$0xf] %vm174, %v237
  %v240 = vld [vmem:[%s11] sm:$0xf]
  %v241 = vld [vmem:[%s11 + $0x4] sm:$0xf]
  %v242 = vld [vmem:[%s11 + $0x8] sm:$0xf]
  %v243 = vld [vmem:[%s11 + $0xc] sm:$0xf]
  %v244 = vld [vmem:[%s12] sm:$0x1]
  %v246 = vperm.slane %v244, 0
  %v252 = vunpack.c.l.b16 %v240
  %v253 = vunpack.c.l.b16 %v241
  %v254 = vunpack.c.l.b16 %v242
  %v255 = vunpack.c.l.b16 %v243
  %v256 = vpack.c.b16 %v253, %v252
  %v257 = vpack.c.b16 %v255, %v254
  %260 = vmatpush.bf16.msra.mxu0 0
  %261 = vmatpush.bf16.msra.mxu0 0
  %262 = vmatpush.bf16.msra.mxu0 0
  %263 = vmatpush.bf16.msra.mxu0 0
  %264 = vmatpush.bf16.msra.mxu0 0
  %265 = vmatpush.bf16.msra.mxu0 0
  %266 = vmatpush.bf16.msra.mxu0 %v257
  %267 = vmatpush.bf16.msra.mxu0 %v256
  %268 = vmatmul.bf16.gmra.mxu0 %v90
  %v269 = vpop.f32.mrf.mxu0
  %v270 = vadd.f32 %v246, %v269
  %v271 = vpop.f32.mrf.mxu0
  %v272 = vadd.f32 %v246, %v271
  %273 = vdwg.mxu0
  %v274 = vld [vmem:[%s13] sm:$0xf]
  %v275 = vld [vmem:[%s13 + $0x4] sm:$0xf]
  %v276 = vld [vmem:[%s13 + $0x8] sm:$0xf]
  %v277 = vld [vmem:[%s13 + $0xc] sm:$0xf]
  %v278 = vld [vmem:[%s14] sm:$0x1]
  %v280 = vperm.slane %v278, 0
  %v286 = vunpack.c.l.b16 %v274
  %v287 = vunpack.c.l.b16 %v275
  %v288 = vunpack.c.l.b16 %v276
  %v289 = vunpack.c.l.b16 %v277
  %v290 = vpack.c.b16 %v287, %v286
  %v291 = vpack.c.b16 %v289, %v288
  %294 = vmatpush.bf16.msra.mxu0 0
  %295 = vmatpush.bf16.msra.mxu0 0
  %296 = vmatpush.bf16.msra.mxu0 0
  %297 = vmatpush.bf16.msra.mxu0 0
  %298 = vmatpush.bf16.msra.mxu0 0
  %299 = vmatpush.bf16.msra.mxu0 0
  %300 = vmatpush.bf16.msra.mxu0 %v291
  %301 = vmatpush.bf16.msra.mxu0 %v290
  %302 = vmatmul.bf16.gmra.mxu0 %v90
  %v303 = vpop.f32.mrf.mxu0
  %v304 = vadd.f32 %v280, %v303
  %v305 = vpop.f32.mrf.mxu0
  %v306 = vadd.f32 %v280, %v305
  %307 = vdwg.mxu0
  %v308 = vld [vmem:[%s16] sm:$0xff]
  %v309 = vld [vmem:[%s16 + $0x8] sm:$0xff]
  %v310 = vmul.f32 %v270, %v308
  %v311 = vmul.f32 %v272, %v309
  %v312 = vld [vmem:[%s15] sm:$0xff]
  %v313 = vld [vmem:[%s15 + $0x8] sm:$0xff]
  %v314 = vmul.f32 %v304, %v312
  %v315 = vmul.f32 %v306, %v313
  %v316 = vadd.f32 %v310, %v314
  %v317 = vadd.f32 %v311, %v315
  %v318 = vpack.c.bf16 %v316, %v316
  %v319 = vpack.c.bf16 %v317, %v317
  %vm320 = vcmask 27648
  %321 = vst.msk [vmem:[%s20] sm:$0xf] %vm320, %v318
  %322 = vst.msk [vmem:[%s20 + $0x4] sm:$0xf] %vm320, %v319
  // Predicated region
  $region70: #{alt_multi_latent_qkv.1} parent=0 // pred_check
    _
  $region71: #{alt_multi_latent_qkv.1} parent=0 // pred_check_branch
    %324 = sbr.rel (0) target = $region73
  $region72: #{alt_multi_latent_qkv.1} parent=0 // pred_region
    _
  $region73: #{alt_multi_latent_qkv.1} parent=0 // pred_fallthru
    _
  // Predicated region
  $region74: #{alt_multi_latent_qkv.1} parent=0 // pred_check
    _
  $region75: #{alt_multi_latent_qkv.1} parent=0 // pred_check_branch
    %326 = sbr.rel (0) target = $region77
  $region76: #{alt_multi_latent_qkv.1} parent=0 // pred_region
    _
  $region77: #{alt_multi_latent_qkv.1} parent=0 // pred_fallthru
    _
  // Predicated region
  $region78: #{alt_multi_latent_qkv.1} parent=0 // pred_check
    _
  $region79: #{alt_multi_latent_qkv.1} parent=0 // pred_check_branch
    %328 = sbr.rel (0) target = $region81
  $region80: #{alt_multi_latent_qkv.1} parent=0 // pred_region
    _
  $region81: #{alt_multi_latent_qkv.1} parent=0 // pred_fallthru
    _
  // Predicated region
  $region82: #{alt_multi_latent_qkv.1} parent=0 // pred_check
    _
  $region83: #{alt_multi_latent_qkv.1} parent=0 // pred_check_branch
    %330 = sbr.rel (0) target = $region85
  $region84: #{alt_multi_latent_qkv.1} parent=0 // pred_region
    _
  $region85: #{alt_multi_latent_qkv.1} parent=0 // pred_fallthru
    _
  // Predicated region
  $region86: #{alt_multi_latent_qkv.1} parent=0 // pred_check
    _
  $region87: #{alt_multi_latent_qkv.1} parent=0 // pred_check_branch
    %332 = sbr.rel (0) target = $region89
  $region88: #{alt_multi_latent_qkv.1} parent=0 // pred_region
    _
  $region89: #{alt_multi_latent_qkv.1} parent=0 // pred_fallthru
    _
  // Predicated region
  $region90: #{alt_multi_latent_qkv.1} parent=0 // pred_check
    _
  $region91: #{alt_multi_latent_qkv.1} parent=0 // pred_check_branch
    %334 = sbr.rel (0) target = $region93
  $region92: #{alt_multi_latent_qkv.1} parent=0 // pred_region
    _
  $region93: #{alt_multi_latent_qkv.1} parent=0 // pred_fallthru
    _
  // Predicated region
  $region94: #{alt_multi_latent_qkv.1} parent=0 // pred_check
    _
  $region95: #{alt_multi_latent_qkv.1} parent=0 // pred_check_branch
    %336 = sbr.rel (0) target = $region97
  $region96: #{alt_multi_latent_qkv.1} parent=0 // pred_region
    _
  $region97: #{alt_multi_latent_qkv.1} parent=0 // pred_fallthru
    _
  // Predicated region
  $region98: #{alt_multi_latent_qkv.1} parent=0 // pred_check
    _
  $region99: #{alt_multi_latent_qkv.1} parent=0 // pred_check_branch
    %338 = sbr.rel (0) target = $region101
  $region100: #{alt_multi_latent_qkv.1} parent=0 // pred_region
    _
  $region101: #{alt_multi_latent_qkv.1} parent=0 // pred_fallthru
    _

</llo_original>
